<compile_context>
chip_gen: v7x
topology: tpu7x:2x2x1
jax: 0.10.0
libtpu: 0.0.40
codegen_flags: <defaults>
</compile_context>

<pallas_src>
import jax
import jax.numpy as jnp
from jax.experimental import pallas as pl
from jax.experimental.pallas import tpu as pltpu


def _copy_kernel(x_ref, o_ref):
    # Elementwise passthrough on the current VMEM tile.
    o_ref[...] = x_ref[...]


# Per-tile VMEM budget (bytes). 4 buffers (2x in, 2x out, double-buffered)
# => ~16 MiB peak, which fits within the explicit 48 MiB scoped-VMEM limit
# below on every generation (v7x only has 64 MiB physical VMEM per core).
_TILE_BYTES = 4 * 1024 * 1024
_MAX_LANE_TILE = 8192  # lanes per block; a multiple of 128


def fairmot_head_forward(x: jax.Array) -> jax.Array:
    """FairMOTHead.forward(input) -> input, computed through a Pallas kernel.

    Accepts any-rank input (the reference module is shape-agnostic).
    """
    orig_shape = x.shape
    dtype = x.dtype
    total = int(x.size)

    if total == 0:
        # Nothing to copy.
        return x

    itemsize = jnp.dtype(dtype).itemsize
    # dtype-aware sublane base: 8 rows for 32-bit, 16 for bf16/f16, 32 for int8/fp8.
    sub = max(8, 32 // max(1, itemsize))

    # Lane-dense flatten: make the last dim a large multiple of 128 whenever the
    # element count allows it (reshape of a contiguous array is pure layout).
    cols = None
    for cand in (_MAX_LANE_TILE, 4096, 2048, 1024, 512, 256, 128):
        if total % cand == 0:
            cols = cand
            break
    if cols is None:
        # Unaligned element count: keep the trailing dim on the lane axis.
        cols = orig_shape[-1] if x.ndim >= 1 else 1
    rows = total // cols
    x2 = x.reshape(rows, cols)

    # Lane (col) tile: full extent when small, otherwise a 128-multiple tile
    # with a cdiv grid (Pallas masks the ragged last block).
    tc = cols if cols <= _MAX_LANE_TILE else _MAX_LANE_TILE

    # Row tile: as many sublane-aligned rows as fit the per-tile byte budget.
    bytes_per_row = max(1, tc * itemsize)
    tr = max(sub, (_TILE_BYTES // bytes_per_row) // sub * sub)
    if tr >= rows:
        tr = rows  # full-extent block is always legal

    grid = (pl.cdiv(rows, tr), pl.cdiv(cols, tc))

    # Alias the output onto the input HBM buffer (op is the identity).  Skip
    # aliasing only in the degenerate case where the reshape short-circuited
    # and x2 *is* x, so donating would invalidate the caller's array.
    aliases = {} if x2 is x else {0: 0}

    out2 = pl.pallas_call(
        _copy_kernel,
        out_shape=jax.ShapeDtypeStruct((rows, cols), dtype),
        grid_spec=pltpu.PrefetchScalarGridSpec(
            num_scalar_prefetch=0,
            grid=grid,
            in_specs=[pl.BlockSpec((tr, tc), lambda i, j: (i, j))],
            out_specs=pl.BlockSpec((tr, tc), lambda i, j: (i, j)),
        ),
        input_output_aliases=aliases,
        compiler_params=pltpu.CompilerParams(
            dimension_semantics=("parallel", "parallel"),
            vmem_limit_bytes=48 * 1024 * 1024,
        ),
    )(x2)

    return out2.reshape(orig_shape)


if __name__ == "__main__":
    # FairMOTHead.__init__ defines no parameters; forward is the identity.
    key = jax.random.PRNGKey(0)
    # NCHW input, consistent with a detection-head feature map.
    x = jax.random.normal(key, (2, 4, 16, 16), dtype=jnp.float32)

    y = fairmot_head_forward(x)
    y = jax.block_until_ready(y)

    # Correctness check against the reference semantics (identity).
    assert y.shape == x.shape and y.dtype == x.dtype
    assert bool(jnp.array_equal(y, x))

    print("KERNEL_OK")
</pallas_src>

<mosaic_0001>
module attributes {stable_mosaic.version = 11 : i64} {
  func.func @_copy_kernel(%arg0: i32, %arg1: i32, %arg2: memref<1x2048xf32, #tpu.memory_space<vmem>>, %arg3: memref<1x2048xf32, #tpu.memory_space<vmem>>) attributes {dimension_semantics = [#tpu.dimension_semantics<parallel>, #tpu.dimension_semantics<parallel>], iteration_bounds = array<i64: 1, 1>, scalar_prefetch = 0 : i64, scratch_operands = 0 : i64, tpu.core_type = #tpu.core_type<tc>, window_params = [{transform_indices = @transform_0, window_bounds = array<i64: 1, 2048>}, {transform_indices = @transform_1, window_bounds = array<i64: 1, 2048>}]} {
    %c0 = arith.constant 0 : index
    %c0_0 = arith.constant 0 : index
    %0 = vector.load %arg2[%c0, %c0_0] : memref<1x2048xf32, #tpu.memory_space<vmem>>, vector<1x2048xf32>
    %c0_1 = arith.constant 0 : index
    %c0_2 = arith.constant 0 : index
    %1 = vector.load %arg3[%c0_1, %c0_2] : memref<1x2048xf32, #tpu.memory_space<vmem>>, vector<1x2048xf32>
    tpu.vector_store %arg3[%c0_1, %c0_2], %0 {strides = array<i32>} : memref<1x2048xf32, #tpu.memory_space<vmem>>, vector<1x2048xf32>,
    return
  }
  func.func @transform_0(%arg0: i32, %arg1: i32) -> (i32, i32) {
    %c0_i32 = arith.constant 0 : i32
    return %arg0, %arg1 : i32, i32
  }
  func.func @transform_1(%arg0: i32, %arg1: i32) -> (i32, i32) {
    %c0_i32 = arith.constant 0 : i32
    return %arg0, %arg1 : i32, i32
  }
}

</mosaic_0001>

<llo_original>
// kernel: tpu_custom_call.1
$region0: #{tpu_custom_call.1}
  #allocation0 [shape = 'u32[]', space=smem, size = 0x4, offset = 0x4, fixed_abs, tag = 'smem constant byte address 0x4 - core index']
  #allocation1 [shape = 'u32[144,128]{1,0:T(1,128)}', space=vmem, size = 0x12000, scoped, tag = 'internal scratch']
  %s0 = inlined_call_operand.hbm [shape: f32[1,2048], index: 0, kind: input, shape index: {}, may-alias: {0,1}]
  %s1 = inlined_call_operand.hbm [shape: f32[1,2048], index: 1, kind: output, shape index: {}, may-alias: {0,1}]
  %s2 = sld [smem:[#allocation0]]
  $region18: #{tpu_custom_call.1} parent=0
    _
  %s4 = ssub.s32 1, %s2
  %s5 = scalar_select 0, %s4, %s2
  $region1: #{tpu_custom_call.1} parent=0
    #allocation2 [shape = 'u8[8192]{0}', space=vmem, size = 0x2000, scoped, tag = 'input window, operand 0, single buffered']
    #allocation3 [shape = 's32[1]{0}', space=sflag, size = 0x4, scoped, tag = 'scoped memory for tpu_custom_call.1']
    #allocation4 [shape = 's32[1]{0}', space=sflag, size = 0x4, scoped, tag = 'scoped memory for tpu_custom_call.1']
    #allocation5 [shape = 'u8[8192]{0}', space=vmem, size = 0x2000, scoped, tag = 'output window, operand 0, single buffered']
    %6 = vsyncpa [#allocation3], 0
    %7 = vsyncpa [#allocation4], 0
    // Predicated region
    $region2: #{tpu_custom_call.1} parent=1 // pred_check
      _
    $region3: #{tpu_custom_call.1} parent=1 // pred_check_branch
      %9 = sbr.rel (0) target = $region5
    $region4: #{tpu_custom_call.1} parent=1 // pred_region
      %s11 = ssub.s32 256, 256
      %12 = vsyncadd [#allocation3], %s11
      %s14 = sshll.u32 [#allocation2], 4
      %s15 = int_to_ptr.vmem [resolvable:$true] %s14
      %17 = dma.hbm_to_vmem [thread:$0]  %s0, 256, %s15, [#allocation3]
    $region5: #{tpu_custom_call.1} parent=1 // pred_fallthru
      _
    // Predicated region
    $region6: #{tpu_custom_call.1} parent=1 // pred_check
      _
    $region7: #{tpu_custom_call.1} parent=1 // pred_check_branch
      %19 = sbr.rel (0) target = $region9
    $region8: #{tpu_custom_call.1} parent=1 // pred_region
      %20 = dma.done [#allocation3], 256
    $region9: #{tpu_custom_call.1} parent=1 // pred_fallthru
      _
    %v21 = vld [vmem:[#allocation2] sm:$0xff]
    %v22 = vld [vmem:[#allocation2 + $0x8] sm:$0xff]
    %23 = vst [vmem:[#allocation5] sm:$0xff] %v21
    %24 = vst [vmem:[#allocation5 + $0x8] sm:$0xff] %v22
    // Predicated region
    $region10: #{tpu_custom_call.1} parent=1 // pred_check
      _
    $region11: #{tpu_custom_call.1} parent=1 // pred_check_branch
      %26 = sbr.rel (0) target = $region13
    $region12: #{tpu_custom_call.1} parent=1 // pred_region
      %s28 = ssub.s32 256, 256
      %29 = vsyncadd [#allocation4], %s28
      %s31 = sshll.u32 [#allocation5], 4
      %s32 = int_to_ptr.vmem [resolvable:$true] %s31
      %34 = dma.vmem_to_hbm [thread:$0]  %s32, 256, %s1, [#allocation4]
    $region13: #{tpu_custom_call.1} parent=1 // pred_fallthru
      _
    // Predicated region
    $region14: #{tpu_custom_call.1} parent=1 // pred_check
      _
    $region15: #{tpu_custom_call.1} parent=1 // pred_check_branch
      %36 = sbr.rel (0) target = $region17
    $region16: #{tpu_custom_call.1} parent=1 // pred_region
      %37 = dma.done [#allocation4], 256
    $region17: #{tpu_custom_call.1} parent=1 // pred_fallthru
      _
    %38 = vsyncpa [#allocation3], 1
    %39 = vsyncpa [#allocation4], 1

</llo_original>
